<compile_context>
chip_gen: v7x
topology: tpu7x:2x2x1
jax: 0.10.0
libtpu: 0.0.40
codegen_flags: <defaults>
</compile_context>

<pallas_src>
import functools

import jax
import jax.numpy as jnp
from jax.experimental import pallas as pl
from jax.experimental.pallas import tpu as pltpu


# ---------------------------------------------------------------------------
# Parameter packing (done ONCE; hoisted out of the per-step path).
# ---------------------------------------------------------------------------
def pack_lstm_params(w_in, b_in, w_rec):
    """Pack PyTorch-layout weights into a single MXU-friendly operand.

    w_in  : (4H, I)   input_map weight
    b_in  : (4H,)     input_map bias
    w_rec : (4H, H)   recurrent_map weight (no bias)

    Returns:
      w_packed : (I+H, 4H) bf16  -- stacked [w_in.T ; w_rec.T], so a single
                 dot([x, h], w_packed) yields all four gate pre-activations.
      b_row    : (1, 4H) f32     -- bias kept in f32, added after f32 accum.
    """
    w_packed = jnp.concatenate(
        [jnp.asarray(w_in, jnp.float32).T, jnp.asarray(w_rec, jnp.float32).T],
        axis=0).astype(jnp.bfloat16)                        # (I+H, 4H)
    b_row = jnp.asarray(b_in, jnp.float32).reshape(1, -1)   # (1, 4H)
    return w_packed, b_row


# ---------------------------------------------------------------------------
# Shared gate math (f32 VPU/EUP path on every generation).
# ---------------------------------------------------------------------------
def _lstm_gates(z, c, H):
    """z: (B, 4H) f32 pre-activations, c: (B, H) f32 cell state."""
    i_pre = z[:, 0 * H:1 * H]
    ig_pre = z[:, 1 * H:2 * H]
    fg_pre = z[:, 2 * H:3 * H]
    og_pre = z[:, 3 * H:4 * H]
    input_activation = jnp.tanh(i_pre)
    input_gate = jax.nn.sigmoid(ig_pre)
    forget_gate = jax.nn.sigmoid(fg_pre + 1.0)
    output_gate = jax.nn.sigmoid(og_pre)
    new_c = c * forget_gate + input_activation * input_gate
    new_h = jnp.tanh(new_c) * output_gate
    return new_h, new_c


# ---------------------------------------------------------------------------
# Single-step kernel: one fused bf16 GEMM, packed (B, 2H) output.
# ---------------------------------------------------------------------------
def lstm_cell_kernel(xh_ref, w_ref, b_ref, c_ref, hc_out_ref, *, hidden):
    H = hidden
    # Single MXU matmul: (B, I+H)bf16 @ (I+H, 4H)bf16 -> (B, 4H)f32 accum.
    z = jnp.dot(xh_ref[...], w_ref[...],
                preferred_element_type=jnp.float32) + b_ref[...]
    new_h, new_c = _lstm_gates(z, c_ref[...], H)
    # One lane-contiguous dense store (B, 2H) instead of two narrow stores.
    hc_out_ref[...] = jnp.concatenate([new_h, new_c], axis=-1)


def lstm_cell(x, h, c, w_packed, b_row):
    """One LSTMCell step.  w_packed/b_row come from pack_lstm_params()."""
    B = x.shape[0]
    H = c.shape[1]
    # Wrapper-side fuse of the two GEMM LHS operands (tiny).
    xh = jnp.concatenate([x, h], axis=-1).astype(jnp.bfloat16)   # (B, I+H)

    vmem = pl.BlockSpec(memory_space=pltpu.MemorySpace.VMEM)
    hc = pl.pallas_call(
        functools.partial(lstm_cell_kernel, hidden=H),
        out_shape=jax.ShapeDtypeStruct((B, 2 * H), jnp.float32),
        in_specs=[vmem] * 4,
        out_specs=vmem,
    )(xh, w_packed, b_row, c.astype(jnp.float32))
    return hc[:, :H], hc[:, H:]


# ---------------------------------------------------------------------------
# Time-fused sequence kernel: grid=(T,), resident weights, VMEM-carried state.
# ---------------------------------------------------------------------------
def lstm_seq_kernel(xs_ref, w_ref, b_ref, h0c0_ref, hs_ref, hc_ref,
                    h_scr, c_scr, *, hidden):
    H = hidden
    t = pl.program_id(0)

    @pl.when(t == 0)
    def _():
        h_scr[...] = h0c0_ref[:, :H]
        c_scr[...] = h0c0_ref[:, H:]

    x = xs_ref[0]                                        # (B, I) bf16
    h_bf = h_scr[...].astype(jnp.bfloat16)               # (B, H) bf16 (dot only)
    xh = jnp.concatenate([x, h_bf], axis=-1)             # (B, I+H) bf16
    z = jnp.dot(xh, w_ref[...],
                preferred_element_type=jnp.float32) + b_ref[...]
    new_h, new_c = _lstm_gates(z, c_scr[...], H)

    # Carry state in VMEM scratch across grid steps (f32 to avoid drift).
    h_scr[...] = new_h
    c_scr[...] = new_c
    hs_ref[0] = new_h                                    # h trajectory
    hc_ref[...] = jnp.concatenate([new_h, new_c], axis=-1)  # final packed state


def lstm_sequence(xs, h0, c0, w_packed, b_row):
    """Apply the LSTMCell over a (T, B, I) sequence inside one pallas_call."""
    T, B, I = xs.shape
    H = h0.shape[1]
    K = I + H

    xs_bf = xs.astype(jnp.bfloat16)
    h0c0 = jnp.concatenate([h0, c0], axis=-1).astype(jnp.float32)  # (B, 2H)

    grid_spec = pltpu.PrefetchScalarGridSpec(
        num_scalar_prefetch=0,
        grid=(T,),
        in_specs=[
            pl.BlockSpec((1, B, I), lambda t: (t, 0, 0)),   # x_t, streamed
            pl.BlockSpec((K, 4 * H), lambda t: (0, 0)),     # weights, resident
            pl.BlockSpec((1, 4 * H), lambda t: (0, 0)),     # bias, resident
            pl.BlockSpec((B, 2 * H), lambda t: (0, 0)),     # initial state
        ],
        out_specs=[
            pl.BlockSpec((1, B, H), lambda t: (t, 0, 0)),   # h trajectory
            pl.BlockSpec((B, 2 * H), lambda t: (0, 0)),     # final (h, c) packed
        ],
        scratch_shapes=[
            pltpu.VMEM((B, H), jnp.float32),                # carried h
            pltpu.VMEM((B, H), jnp.float32),                # carried c
        ],
    )

    hs, hc = pl.pallas_call(
        functools.partial(lstm_seq_kernel, hidden=H),
        out_shape=(jax.ShapeDtypeStruct((T, B, H), jnp.float32),
                   jax.ShapeDtypeStruct((B, 2 * H), jnp.float32)),
        grid_spec=grid_spec,
        compiler_params=pltpu.CompilerParams(
            dimension_semantics=("arbitrary",)),            # serial recurrence
    )(xs_bf, w_packed, b_row, h0c0)
    return hs, hc[:, :H], hc[:, H:]


# ---------------------------------------------------------------------------
# Pure-JAX references (direct transcription of the PyTorch forward).
# ---------------------------------------------------------------------------
def lstm_cell_ref(x, h, c, w_in, b_in, w_rec):
    H = h.shape[1]
    z = x @ w_in.T + b_in + h @ w_rec.T
    i_pre, ig_pre, fg_pre, og_pre = (z[:, 0:H], z[:, H:2 * H],
                                     z[:, 2 * H:3 * H], z[:, 3 * H:4 * H])
    input_activation = jnp.tanh(i_pre)
    input_gate = jax.nn.sigmoid(ig_pre)
    forget_gate = jax.nn.sigmoid(fg_pre + 1.0)
    output_gate = jax.nn.sigmoid(og_pre)
    new_cell = c * forget_gate + input_activation * input_gate
    new_h = jnp.tanh(new_cell) * output_gate
    return new_h, new_cell


def lstm_seq_ref(xs, h0, c0, w_in, b_in, w_rec):
    def step(carry, x):
        h, c = carry
        h, c = lstm_cell_ref(x, h, c, w_in, b_in, w_rec)
        return (h, c), h
    (hT, cT), hs = jax.lax.scan(step, (h0, c0), xs)
    return hs, hT, cT


def init_params(key, input_size, hidden_size):
    k1, k2, k3 = jax.random.split(key, 3)
    # Forward semantics do not depend on the init scheme; scaled uniforms
    # roughly matching xavier / orthogonal magnitudes.
    lim_in = (6.0 / (input_size + 4 * hidden_size)) ** 0.5
    w_in = jax.random.uniform(k1, (4 * hidden_size, input_size), jnp.float32,
                              -lim_in, lim_in)
    b_in = jax.random.uniform(k2, (4 * hidden_size,), jnp.float32, -0.1, 0.1)
    lim_rec = (6.0 / (hidden_size + 4 * hidden_size)) ** 0.5
    w_rec = jax.random.uniform(k3, (4 * hidden_size, hidden_size), jnp.float32,
                               -lim_rec, lim_rec)
    return w_in, b_in, w_rec


if __name__ == "__main__":
    # batch=8 (full f32 sublane), input=8, hidden=32 (4H = 128 lanes), T=8.
    B, I, H, T = 8, 8, 32, 8
    key = jax.random.PRNGKey(0)
    kx, kh, kc, kp, ks = jax.random.split(key, 5)

    x = jax.random.normal(kx, (B, I), jnp.float32)
    h0 = 0.1 * jax.random.normal(kh, (B, H), jnp.float32)
    c0 = 0.1 * jax.random.normal(kc, (B, H), jnp.float32)
    xs = jax.random.normal(ks, (T, B, I), jnp.float32)
    w_in, b_in, w_rec = init_params(kp, I, H)

    # Pack parameters ONCE (transpose / stack / bf16 cast hoisted off the
    # per-step path).
    w_packed, b_row = pack_lstm_params(w_in, b_in, w_rec)

    # --- Single-step cell (matches the PyTorch module call signature). -----
    new_h, new_c = lstm_cell(x, h0, c0, w_packed, b_row)
    (new_h, new_c) = jax.block_until_ready((new_h, new_c))
    ref_h, ref_c = lstm_cell_ref(x, h0, c0, w_in, b_in, w_rec)
    assert new_h.shape == (B, H) and new_c.shape == (B, H)
    # bf16 matmul operands -> relaxed tolerance (accumulation stays f32).
    assert jnp.allclose(new_h, ref_h, rtol=2e-2, atol=2e-2), "h mismatch"
    assert jnp.allclose(new_c, ref_c, rtol=2e-2, atol=2e-2), "c mismatch"

    # --- Time-fused sequence (grid=(T,), resident weights, carried state). --
    hs, hT, cT = lstm_sequence(xs, h0, c0, w_packed, b_row)
    (hs, hT, cT) = jax.block_until_ready((hs, hT, cT))
    hs_ref, hT_ref, cT_ref = lstm_seq_ref(xs, h0, c0, w_in, b_in, w_rec)
    assert hs.shape == (T, B, H)
    assert jnp.allclose(hs, hs_ref, rtol=5e-2, atol=5e-2), "hs trajectory mismatch"
    assert jnp.allclose(hT, hT_ref, rtol=5e-2, atol=5e-2), "final h mismatch"
    assert jnp.allclose(cT, cT_ref, rtol=5e-2, atol=5e-2), "final c mismatch"

    print("KERNEL_OK")
</pallas_src>

<mosaic_0001>
module attributes {stable_mosaic.version = 11 : i64} {
  func.func @lstm_cell_kernel(%arg0: memref<8x40xbf16, #tpu.memory_space<vmem>>, %arg1: memref<40x128xbf16, #tpu.memory_space<vmem>>, %arg2: memref<1x128xf32, #tpu.memory_space<vmem>>, %arg3: memref<8x32xf32, #tpu.memory_space<vmem>>, %arg4: memref<8x64xf32, #tpu.memory_space<vmem>>) attributes {dimension_semantics = [], scalar_prefetch = 0 : i64, scratch_operands = 0 : i64, tpu.core_type = #tpu.core_type<tc>} {
    %c0 = arith.constant 0 : index
    %c0_0 = arith.constant 0 : index
    %0 = vector.load %arg0[%c0, %c0_0] : memref<8x40xbf16, #tpu.memory_space<vmem>>, vector<8x40xbf16>
    %c0_1 = arith.constant 0 : index
    %c0_2 = arith.constant 0 : index
    %1 = vector.load %arg1[%c0_1, %c0_2] : memref<40x128xbf16, #tpu.memory_space<vmem>>, vector<40x128xbf16>
    %cst = arith.constant dense<0.000000e+00> : vector<8x128xf32>
    %2 = tpu.matmul %0, %1, %cst {dimension_numbers = #tpu.dot_dimension_numbers<[1], [0], [0], [1], [0, 0, 1, 1], [], []>} : vector<8x40xbf16>, vector<40x128xbf16>, vector<8x128xf32> -> vector<8x128xf32>
    %c0_3 = arith.constant 0 : index
    %c0_4 = arith.constant 0 : index
    %3 = vector.load %arg2[%c0_3, %c0_4] : memref<1x128xf32, #tpu.memory_space<vmem>>, vector<1x128xf32>
    %4 = vector.broadcast %3 : vector<1x128xf32> to vector<8x128xf32>
    %5 = arith.addf %2, %4 : vector<8x128xf32>
    %c0_5 = arith.constant 0 : index
    %c0_6 = arith.constant 0 : index
    %6 = vector.load %arg3[%c0_5, %c0_6] : memref<8x32xf32, #tpu.memory_space<vmem>>, vector<8x32xf32>
    %7 = vector.extract_strided_slice %5 {offsets = [0, 0], sizes = [8, 32], strides = [1, 1]} : vector<8x128xf32> to vector<8x32xf32>
    %8 = vector.extract_strided_slice %5 {offsets = [0, 32], sizes = [8, 32], strides = [1, 1]} : vector<8x128xf32> to vector<8x32xf32>
    %9 = vector.extract_strided_slice %5 {offsets = [0, 64], sizes = [8, 32], strides = [1, 1]} : vector<8x128xf32> to vector<8x32xf32>
    %10 = vector.extract_strided_slice %5 {offsets = [0, 96], sizes = [8, 32], strides = [1, 1]} : vector<8x128xf32> to vector<8x32xf32>
    %11 = math.tanh %7 : vector<8x32xf32>
    %12 = arith.negf %8 : vector<8x32xf32>
    %13 = math.exp %12 : vector<8x32xf32>
    %cst_7 = arith.constant 1.000000e+00 : f32
    %14 = vector.broadcast %cst_7 : f32 to vector<8x32xf32>
    %15 = arith.addf %14, %13 : vector<8x32xf32>
    %16 = arith.divf %14, %15 : vector<8x32xf32>
    %cst_8 = arith.constant 1.000000e+00 : f32
    %17 = vector.broadcast %cst_8 : f32 to vector<8x32xf32>
    %18 = arith.addf %9, %17 : vector<8x32xf32>
    %19 = arith.negf %18 : vector<8x32xf32>
    %20 = math.exp %19 : vector<8x32xf32>
    %cst_9 = arith.constant 1.000000e+00 : f32
    %21 = vector.broadcast %cst_9 : f32 to vector<8x32xf32>
    %22 = arith.addf %21, %20 : vector<8x32xf32>
    %23 = arith.divf %21, %22 : vector<8x32xf32>
    %24 = arith.negf %10 : vector<8x32xf32>
    %25 = math.exp %24 : vector<8x32xf32>
    %cst_10 = arith.constant 1.000000e+00 : f32
    %26 = vector.broadcast %cst_10 : f32 to vector<8x32xf32>
    %27 = arith.addf %26, %25 : vector<8x32xf32>
    %28 = arith.divf %26, %27 : vector<8x32xf32>
    %29 = arith.mulf %6, %23 : vector<8x32xf32>
    %30 = arith.mulf %11, %16 : vector<8x32xf32>
    %31 = arith.addf %29, %30 : vector<8x32xf32>
    %32 = math.tanh %31 : vector<8x32xf32>
    %33 = arith.mulf %32, %28 : vector<8x32xf32>
    %34 = tpu.concatenate %33, %31 in 1 : vector<8x32xf32>, vector<8x32xf32> -> vector<8x64xf32>
    %c0_11 = arith.constant 0 : index
    %c0_12 = arith.constant 0 : index
    %35 = vector.load %arg4[%c0_11, %c0_12] : memref<8x64xf32, #tpu.memory_space<vmem>>, vector<8x64xf32>
    tpu.vector_store %arg4[%c0_11, %c0_12], %34 {strides = array<i32>} : memref<8x64xf32, #tpu.memory_space<vmem>>, vector<8x64xf32>,
    return
  }
}

</mosaic_0001>

<llo_original>
// kernel: tpu_custom_call.1
$region0: #{tpu_custom_call.1}
  #allocation0 [shape = 'u32[]', space=smem, size = 0x4, offset = 0x4, fixed_abs, tag = 'smem constant byte address 0x4 - core index']
  #allocation1 [shape = 'u32[144,128]{1,0:T(1,128)}', space=vmem, size = 0x12000, scoped, tag = 'internal scratch']
  %s0 = inlined_call_operand.hbm [shape: bf16[8,40], index: 0, kind: input, shape index: {}]
  %s1 = inlined_call_operand.hbm [shape: bf16[40,128], index: 1, kind: input, shape index: {}]
  %s2 = inlined_call_operand.vmem [shape: f32[1,128], index: 2, kind: input, shape index: {}]
  %s3 = inlined_call_operand.vmem [shape: f32[8,32], index: 3, kind: input, shape index: {}]
  %s4 = inlined_call_operand.hbm [shape: f32[8,64], index: 4, kind: output, shape index: {}]
  %s5 = sld [smem:[#allocation0]]
  $region34: #{tpu_custom_call.1} parent=0
    _
  %s7 = ssub.s32 1, %s5
  %s8 = scalar_select 0, %s7, %s5
  $region1: #{tpu_custom_call.1} parent=0
    #allocation2 [shape = 'u8[2048]{0}', space=vmem, size = 0x800, scoped, tag = 'input window, operand 0, single buffered']
    #allocation3 [shape = 's32[1]{0}', space=sflag, size = 0x4, scoped, tag = 'scoped memory for tpu_custom_call.1']
    #allocation4 [shape = 's32[1]{0}', space=sflag, size = 0x4, scoped, tag = 'scoped memory for tpu_custom_call.1']
    #allocation5 [shape = 'u8[10240]{0}', space=vmem, size = 0x2800, scoped, tag = 'input window, operand 1, single buffered']
    #allocation6 [shape = 's32[1]{0}', space=sflag, size = 0x4, scoped, tag = 'scoped memory for tpu_custom_call.1']
    #allocation7 [shape = 'u8[4096]{0}', space=vmem, size = 0x1000, scoped, tag = 'output window, operand 0, single buffered']
    %9 = vsyncpa [#allocation3], 0
    %10 = vsyncpa [#allocation6], 0
    %11 = vsyncpa [#allocation4], 0
    // Predicated region
    $region2: #{tpu_custom_call.1} parent=1 // pred_check
      _
    $region3: #{tpu_custom_call.1} parent=1 // pred_check_branch
      %13 = sbr.rel (0) target = $region5
    $region4: #{tpu_custom_call.1} parent=1 // pred_region
      %s15 = ssub.s32 64, 64
      %16 = vsyncadd [#allocation3], %s15
      %s18 = sshll.u32 [#allocation2], 4
      %s19 = int_to_ptr.vmem [resolvable:$true] %s18
      %21 = dma.hbm_to_vmem [thread:$0]  %s0, 64, %s19, [#allocation3]
    $region5: #{tpu_custom_call.1} parent=1 // pred_fallthru
      _
    // Predicated region
    $region6: #{tpu_custom_call.1} parent=1 // pred_check
      _
    $region7: #{tpu_custom_call.1} parent=1 // pred_check_branch
      %23 = sbr.rel (0) target = $region9
    $region8: #{tpu_custom_call.1} parent=1 // pred_region
      %s25 = ssub.s32 320, 320
      %26 = vsyncadd [#allocation6], %s25
      %s27 = sshll.u32 [#allocation5], 4
      %s28 = int_to_ptr.vmem [resolvable:$true] %s27
      %33 = dma.hbm_to_vmem [thread:$0]  %s1, 320, %s28, [#allocation6], 64, 64, 4
    $region9: #{tpu_custom_call.1} parent=1 // pred_fallthru
      _
    // Predicated region
    $region10: #{tpu_custom_call.1} parent=1 // pred_check
      _
    $region11: #{tpu_custom_call.1} parent=1 // pred_check_branch
      %35 = sbr.rel (0) target = $region13
    $region12: #{tpu_custom_call.1} parent=1 // pred_region
      _
    $region13: #{tpu_custom_call.1} parent=1 // pred_fallthru
      _
    // Predicated region
    $region14: #{tpu_custom_call.1} parent=1 // pred_check
      _
    $region15: #{tpu_custom_call.1} parent=1 // pred_check_branch
      %37 = sbr.rel (0) target = $region17
    $region16: #{tpu_custom_call.1} parent=1 // pred_region
      _
    $region17: #{tpu_custom_call.1} parent=1 // pred_fallthru
      _
    // Predicated region
    $region18: #{tpu_custom_call.1} parent=1 // pred_check
      _
    $region19: #{tpu_custom_call.1} parent=1 // pred_check_branch
      %39 = sbr.rel (0) target = $region21
    $region20: #{tpu_custom_call.1} parent=1 // pred_region
      %40 = dma.done [#allocation3], 64
    $region21: #{tpu_custom_call.1} parent=1 // pred_fallthru
      _
    // Predicated region
    $region22: #{tpu_custom_call.1} parent=1 // pred_check
      _
    $region23: #{tpu_custom_call.1} parent=1 // pred_check_branch
      %42 = sbr.rel (0) target = $region25
    $region24: #{tpu_custom_call.1} parent=1 // pred_region
      %43 = dma.done [#allocation6], 320
    $region25: #{tpu_custom_call.1} parent=1 // pred_fallthru
      _
    %v45 = vld [vmem:[#allocation2] sm:$0xf]
    %v46 = vld [vmem:[#allocation5] sm:$0xf]
    %v47 = vld [vmem:[#allocation5 + $0x4] sm:$0xf]
    %v48 = vld [vmem:[#allocation5 + $0x8] sm:$0xf]
    %v49 = vld [vmem:[#allocation5 + $0xc] sm:$0xf]
    %v50 = vld [vmem:[#allocation5 + $0x10] sm:$0xf]
    %v51 = vld [vmem:[%s2] sm:$0x1]
    %v53 = vlaneseq
    %v54 = vshrl.u32 %v53, 7
    %v55 = vsub.s32 0, %v54
    %v56 = vrot.slane %v51, %v55
    %v63 = vunpack.c.l.b16 %v46
    %v64 = vunpack.c.l.b16 %v47
    %v65 = vunpack.c.l.b16 %v48
    %v66 = vunpack.c.l.b16 %v49
    %v67 = vunpack.c.l.b16 %v50
    %v68 = vpack.c.b16 %v64, %v63
    %v69 = vpack.c.b16 %v66, %v65
    %v70 = vpack.c.b16 %v67, %v67
    %vm73 = vcmask 326656
    %v75 = vsel %vm73, %v45, 0
    %vm77 = vcmask 1043456
    %v79 = vsel %vm77, %v70, 0
    %81 = vmatprep.subr.bf16.mxu0 0
    %82 = vmatpush1.bf16.msra.mxu0 %v68
    %83 = vmatprep.subr.bf16.mxu0 0
    %84 = vmatpush1.bf16.msra.mxu0 %v69
    %85 = vmatprep.subr.bf16.mxu0 0
    %86 = vmatpush1.bf16.msra.mxu0 %v79
    %87 = vmatprep.subr.bf16.mxu0 0
    %88 = vmatpush1.bf16.msra.mxu0 0
    %89 = vmatprep.subr.bf16.mxu0 0
    %90 = vmatpush1.bf16.msra.mxu0 0
    %91 = vmatprep.subr.bf16.mxu0 0
    %92 = vmatpush1.bf16.msra.mxu0 0
    %93 = vmatprep.subr.bf16.mxu0 0
    %94 = vmatpush1.bf16.msra.mxu0 0
    %95 = vmatprep.subr.bf16.mxu0 0
    %96 = vmatpush1.bf16.msra.mxu0 0
    %97 = vmatprep.subr.bf16.mxu0 0
    %98 = vmatpush1.bf16.msra.mxu0 0
    %99 = vmatprep.subr.bf16.mxu0 0
    %100 = vmatpush1.bf16.msra.mxu0 0
    %101 = vmatprep.subr.bf16.mxu0 0
    %102 = vmatpush1.bf16.msra.mxu0 0
    %103 = vmatprep.subr.bf16.mxu0 0
    %104 = vmatpush1.bf16.msra.mxu0 0
    %105 = vmatprep.subr.bf16.mxu0 0
    %106 = vmatpush1.bf16.msra.mxu0 0
    %107 = vmatprep.subr.bf16.mxu0 0
    %108 = vmatpush1.bf16.msra.mxu0 0
    %109 = vmatprep.subr.bf16.mxu0 0
    %110 = vmatpush1.bf16.msra.mxu0 0
    %111 = vmatprep.subr.bf16.mxu0 0
    %112 = vmatpush1.bf16.msra.mxu0 0
    %113 = vmatprep.mubr.bf16.mxu0 0
    %114 = vmatmul.mubr.bf16.gmra.mrb[0].mxu0 %v75
    %v115 = vpop.f32.mrb[0].mxu0
    %v116 = vadd.f32 %v56, %v115
    %v117 = vpop.f32.mrb[0].mxu0
    %v118 = vpop.f32.mrb[0].mxu0
    %v119 = vpop.f32.mrb[0].mxu0
    %120 = vdwg.mxu0
    %v121 = vld [vmem:[%s3] sm:$0xff]
    %v122 = vtanh.pop %v116
    %v123 = vxor.u32 %v116, 2147483648
    %v124 = vmul.f32 %v123, 1.442695
    %v125 = vpow.pop %v124
    %v126 = vadd.f32 %v125, 1.0
    %v127 = vrcp.pop %v126
    %v128 = vmul.f32 1.0, %v127
    %v129 = vadd.f32 %v116, 1.0
    %v130 = vxor.u32 %v129, 2147483648
    %v131 = vmul.f32 %v130, 1.442695
    %v132 = vpow.pop %v131
    %v133 = vadd.f32 %v132, 1.0
    %v134 = vrcp.pop %v133
    %v135 = vmul.f32 1.0, %v134
    %137 = vrot.lane.b32.xlu0 %v135, 64
    %v138 = vpop.permute.xlu0 %137
    %v140 = vmul.f32 %v121, %v138
    %142 = vrot.lane.b32.xlu0 %v128, 96
    %v143 = vpop.permute.xlu0 %142
    %v145 = vmul.f32 %v122, %v143
    %v146 = vadd.f32 %v140, %v145
    %v147 = vtanh.pop %v146
    %148 = vrot.lane.b32.xlu0 %v128, 32
    %v149 = vpop.permute.xlu0 %148
    %v151 = vmul.f32 %v147, %v149
    %153 = vrot.lane.b32.xlu0 %v146, 32
    %v154 = vpop.permute.xlu0 %153
    %vm156 = vcmask 261120
    %v157 = vsel %vm156, %v151, %v154
    %vm158 = vcmask 523264
    %159 = vst.msk [vmem:[#allocation7] sm:$0xff] %vm158, %v157
    // Predicated region
    $region26: #{tpu_custom_call.1} parent=1 // pred_check
      _
    $region27: #{tpu_custom_call.1} parent=1 // pred_check_branch
      %161 = sbr.rel (0) target = $region29
    $region28: #{tpu_custom_call.1} parent=1 // pred_region
      %s163 = ssub.s32 128, 128
      %164 = vsyncadd [#allocation4], %s163
      %s166 = sshll.u32 [#allocation7], 4
      %s167 = int_to_ptr.vmem [resolvable:$true] %s166
      %169 = dma.vmem_to_hbm [thread:$0]  %s167, 128, %s4, [#allocation4]
    $region29: #{tpu_custom_call.1} parent=1 // pred_fallthru
      _
    // Predicated region
    $region30: #{tpu_custom_call.1} parent=1 // pred_check
      _
    $region31: #{tpu_custom_call.1} parent=1 // pred_check_branch
      %171 = sbr.rel (0) target = $region33
    $region32: #{tpu_custom_call.1} parent=1 // pred_region
      %172 = dma.done [#allocation4], 128
    $region33: #{tpu_custom_call.1} parent=1 // pred_fallthru
      _
    %173 = vsyncpa [#allocation3], 1
    %174 = vsyncpa [#allocation6], 1
    %175 = vsyncpa [#allocation4], 1

</llo_original>
